<compile_context>
chip_gen: v7x
topology: tpu7x:2x2x1
jax: 0.10.0
libtpu: 0.0.40
codegen_flags: <defaults>
</compile_context>

<pallas_src>
import jax
import jax.numpy as jnp
from jax import lax
from jax.experimental import pallas as pl
from jax.experimental.pallas import tpu as pltpu


def _randint_relu_kernel(seed_ref, o_ref):
    # murmur3 finalizer of the int32 seed; bit-identical to the uint32 version
    # (two's-complement mul/xor wrap identically; logical shift is explicit).
    h = seed_ref[0]                                        # int32 scalar (SMEM)
    h = h ^ lax.shift_right_logical(h, jnp.int32(16))
    h = h * jnp.int32(-2048144789)                         # 0x85EBCA6B
    h = h ^ lax.shift_right_logical(h, jnp.int32(13))
    h = h * jnp.int32(-1028477387)                         # 0xC2B2AE35
    h = h ^ lax.shift_right_logical(h, jnp.int32(16))
    # randint(low=0, high=2) == low bit of the hashed word -> {0, 1}.
    bit = h & jnp.int32(1)
    # ReLU (identity for values in {0, 1}; kept for exact module semantics).
    o_ref[0] = jnp.maximum(bit, jnp.int32(0))


def _randint_relu(seed):
    """pallas_call wrapper that takes ONLY the seed (no ignored x1 argument)."""
    return pl.pallas_call(
        _randint_relu_kernel,
        out_shape=jax.ShapeDtypeStruct((1,), jnp.int32),
        in_specs=[pl.BlockSpec(memory_space=pltpu.SMEM)],
        out_specs=pl.BlockSpec(memory_space=pltpu.SMEM),
        # Output reuses the seed's buffer (same shape/dtype) -> no extra
        # output allocation or writeback.
        input_output_aliases={0: 0},
        # Near-zero advisory cost so XLA's scheduler does not serialize
        # the surrounding graph around this custom call.
        cost_estimate=pl.CostEstimate(flops=8, transcendentals=0,
                                      bytes_accessed=8),
        compiler_params=pltpu.CompilerParams(vmem_limit_bytes=1 << 20),
    )(seed)


def module_a_forward(x1, seed):
    """Pallas equivalent of the PyTorch module's forward pass.

    Args:
      x1:   ignored input tensor (kept for signature parity with the module;
            dropped in Python so it never crosses the kernel boundary).
      seed: int32 array of shape (1,) used as the RNG seed/counter.

    Returns:
      int32 array of shape (1,) with a value in {0, 1} (after ReLU).
    """
    del x1  # unused, exactly as in the reference module; never traced/passed
    return _randint_relu(seed)


if __name__ == "__main__":
    key = jax.random.PRNGKey(0)
    k_x, k_seed = jax.random.split(key)

    # Example input consistent with a small NCHW tensor (ignored by forward).
    x1 = jax.random.normal(k_x, (2, 4, 16, 16), dtype=jnp.float32)

    # Deterministic scalar seed for the in-kernel hash RNG.
    seed = jax.random.randint(k_seed, (1,), 0, 2**31 - 1, dtype=jnp.int32)

    out = module_a_forward(x1, seed)
    out = jax.block_until_ready(out)

    assert out.shape == (1,)
    assert out.dtype == jnp.int32
    assert int(out[0]) in (0, 1)
    print("KERNEL_OK")
</pallas_src>

<mosaic_0001>
module attributes {stable_mosaic.version = 11 : i64} {
  func.func @_randint_relu_kernel(%arg0: memref<1xi32, #tpu.memory_space<smem>>, %arg1: memref<1xi32, #tpu.memory_space<smem>>) attributes {dimension_semantics = [], scalar_prefetch = 0 : i64, scratch_operands = 0 : i64, tpu.core_type = #tpu.core_type<tc>} {
    %c0 = arith.constant 0 : index
    %0 = memref.load %arg0[%c0] : memref<1xi32, #tpu.memory_space<smem>>
    %c16_i32 = arith.constant 16 : i32
    %1 = arith.shrui %0, %c16_i32 : i32
    %2 = arith.xori %0, %1 : i32
    %c-2048144789_i32 = arith.constant -2048144789 : i32
    %3 = arith.muli %2, %c-2048144789_i32 : i32
    %c13_i32 = arith.constant 13 : i32
    %4 = arith.shrui %3, %c13_i32 : i32
    %5 = arith.xori %3, %4 : i32
    %c-1028477387_i32 = arith.constant -1028477387 : i32
    %6 = arith.muli %5, %c-1028477387_i32 : i32
    %c16_i32_0 = arith.constant 16 : i32
    %7 = arith.shrui %6, %c16_i32_0 : i32
    %8 = arith.xori %6, %7 : i32
    %c1_i32 = arith.constant 1 : i32
    %9 = arith.andi %8, %c1_i32 : i32
    %c0_i32 = arith.constant 0 : i32
    %10 = arith.maxsi %9, %c0_i32 : i32
    %c0_1 = arith.constant 0 : index
    %11 = memref.load %arg1[%c0_1] : memref<1xi32, #tpu.memory_space<smem>>
    memref.store %10, %arg1[%c0_1] : memref<1xi32, #tpu.memory_space<smem>>
    return
  }
}

</mosaic_0001>

<llo_original>
// kernel: tpu_custom_call.1
$region0: #{tpu_custom_call.1}
  #allocation0 [shape = 'u32[]', space=smem, size = 0x4, offset = 0x4, fixed_abs, tag = 'smem constant byte address 0x4 - core index']
  #allocation1 [shape = 'u32[144,128]{1,0:T(1,128)}', space=vmem, size = 0x12000, scoped, tag = 'internal scratch']
  #allocation2 [shape = 's32[1]{0:T(128)S(6)}', space=smem, size = 0x200, scoped, tag = 'scoped memory for tpu_custom_call.1']
  %s0 = inlined_call_operand.<no memory space> [shape: s32[1], index: 0, kind: input, shape index: {}, may-alias: {0,1}]
  %s1 = inlined_call_operand.hbm [shape: s32[1], index: 1, kind: output, shape index: {}, may-alias: {0,1}]
  %s2 = sld [smem:[#allocation0]]
  $region14: #{tpu_custom_call.1} parent=0
    _
  %s4 = ssub.s32 1, %s2
  %s5 = scalar_select 0, %s4, %s2
  %6 = sst [smem:[#allocation2]] %s0
  $region1: #{tpu_custom_call.1} parent=0
    #allocation3 [shape = 'u8[512]{0}', space=smem, size = 0x200, scoped, tag = 'output window, operand 0, single buffered']
    #allocation4 [shape = 's32[1]{0}', space=sflag, size = 0x4, scoped, tag = 'scoped memory for tpu_custom_call.1']
    %7 = vsyncpa [#allocation4], 0
    // Predicated region
    $region2: #{tpu_custom_call.1} parent=1 // pred_check
      _
    $region3: #{tpu_custom_call.1} parent=1 // pred_check_branch
      %9 = sbr.rel (0) target = $region5
    $region4: #{tpu_custom_call.1} parent=1 // pred_region
      _
    $region5: #{tpu_custom_call.1} parent=1 // pred_fallthru
      _
    %s10 = sld [smem:[#allocation2]]
    %s11 = sshrl.u32 %s10, 16
    %s12 = sxor.u32 %s10, %s11
    %s13 = smul.u32 %s12, 2246822507
    %s14 = sshrl.u32 %s13, 13
    %s15 = sxor.u32 %s13, %s14
    %s16 = smul.u32 %s15, 3266489909
    %s17 = sshrl.u32 %s16, 16
    %s18 = sxor.u32 %s16, %s17
    %s19 = sand.u32 %s18, 1
    %p20 = scmp.gt.s32.totalorder %s19, 0
    %s21 = scalar_select %p20, %s19, 0
    %s22 = scalar_lea.smem [#allocation3], 0
    %23 = sst [smem:[%s22]] %s21
    // Predicated region
    $region6: #{tpu_custom_call.1} parent=1 // pred_check
      _
    $region7: #{tpu_custom_call.1} parent=1 // pred_check_branch
      %25 = sbr.rel (0) target = $region9
    $region8: #{tpu_custom_call.1} parent=1 // pred_region
      %s27 = ssub.s32 16, 16
      %28 = vsyncadd [#allocation4], %s27
      %31 = dma.smem_to_hbm [#allocation3], 16, %s1, [#allocation4]
    $region9: #{tpu_custom_call.1} parent=1 // pred_fallthru
      _
    // Predicated region
    $region10: #{tpu_custom_call.1} parent=1 // pred_check
      _
    $region11: #{tpu_custom_call.1} parent=1 // pred_check_branch
      %33 = sbr.rel (0) target = $region13
    $region12: #{tpu_custom_call.1} parent=1 // pred_region
      %34 = dma.done [#allocation4], 16
    $region13: #{tpu_custom_call.1} parent=1 // pred_fallthru
      _
    %35 = sfence
    %36 = vsyncpa [#allocation4], 1

</llo_original>
